<compile_context>
chip_gen: v6e
topology: v6e:2x2x1
jax: 0.10.0
libtpu: 0.0.40
codegen_flags: <defaults>
</compile_context>

<pallas_src>
import jax
import jax.numpy as jnp
from jax.experimental import pallas as pl
from jax.experimental.pallas import tpu as pltpu


def _round_up(x, m):
    return (x + m - 1) // m * m


def sage_kernel(a_ref, xn_ref, xs_ref, wl_ref, wr_ref, b_ref, o_ref, acc_ref):
    """One (row-tile i, neighbor-tile k) grid step.

    a_ref  : (TM, TK)      bf16  row-normalized adjacency tile A[i, k]
    xn_ref : (TK, IN_PAD)  bf16  neighbor features X[k, :]
    xs_ref : (TM, IN_PAD)  f32   self features X[i, :]
    wl_ref : (IN_PAD, OUT_PAD) f32, wr_ref: (IN_PAD, OUT_PAD) f32, b_ref: (1, OUT_PAD) f32
    o_ref  : (TM, OUT_PAD) f32
    acc_ref: (TM, IN_PAD)  f32   VMEM accumulator for mean-aggregated neighbor features
    """
    k = pl.program_id(1)

    @pl.when(k == 0)
    def _init():
        acc_ref[...] = jnp.zeros_like(acc_ref)

    # Mean aggregation: accumulate A_ik @ X_k on the MXU (bf16 inputs, f32 accumulation).
    acc_ref[...] += jnp.dot(a_ref[...], xn_ref[...], preferred_element_type=jnp.float32)

    # Finalize once per row tile: lin_l(agg) + lin_r(x_i) + bias, then ReLU.
    @pl.when(k == pl.num_programs(1) - 1)
    def _finalize():
        h = (
            jnp.dot(acc_ref[...], wl_ref[...], preferred_element_type=jnp.float32)
            + jnp.dot(xs_ref[...], wr_ref[...], preferred_element_type=jnp.float32)
            + b_ref[...]
        )
        o_ref[...] = jnp.maximum(h, 0.0).astype(o_ref.dtype)
        # TODO(synk): dropout_value > 0 would need pltpu.prng_* masking; default 0.0 -> omitted.


def graphsage_forward(x, edge_index, w_l, w_r, bias, *, tm=256, tk=512):
    """x: [N, in_dim] f32, edge_index: [2, E] int32 (row 0 = src j, row 1 = dst i)."""
    n, in_dim = x.shape
    out_dim = w_l.shape[1]

    # ---- glue (plain JAX): dense row-normalized adjacency for mean aggregation ----
    # TODO(synk): for large sparse graphs replace the dense NxN adjacency with a CSR
    # scalar-prefetch gather (PrefetchScalarGridSpec + per-row-block neighbor DMA),
    # cutting HBM traffic from O(N^2) to O(E*in_dim).
    src, dst = edge_index[0], edge_index[1]
    adj = jnp.zeros((n, n), dtype=jnp.float32).at[dst, src].add(1.0)
    deg = jnp.sum(adj, axis=1, keepdims=True)
    adj = (adj / jnp.maximum(deg, 1.0)).astype(jnp.bfloat16)  # bf16 halves A HBM bytes

    # ---- zero-padding: lane-dense features/outputs + tile-aligned node axis ----
    in_pad = _round_up(in_dim, 128)
    out_pad = _round_up(out_dim, 128)
    n_pad = _round_up(n, 128)
    tm = min(tm, n_pad)
    tk = min(tk, n_pad)
    n_pad = _round_up(_round_up(n_pad, tm), tk)

    adj_p = jnp.zeros((n_pad, n_pad), jnp.bfloat16).at[:n, :n].set(adj)
    x_nbr = jnp.zeros((n_pad, in_pad), jnp.bfloat16).at[:n, :in_dim].set(x.astype(jnp.bfloat16))
    x_self = jnp.zeros((n_pad, in_pad), jnp.float32).at[:n, :in_dim].set(x)
    wl_p = jnp.zeros((in_pad, out_pad), jnp.float32).at[:in_dim, :out_dim].set(w_l)
    wr_p = jnp.zeros((in_pad, out_pad), jnp.float32).at[:in_dim, :out_dim].set(w_r)
    b_p = jnp.zeros((1, out_pad), jnp.float32).at[0, :out_dim].set(bias)

    grid = (n_pad // tm, n_pad // tk)

    out_p = pl.pallas_call(
        sage_kernel,
        out_shape=jax.ShapeDtypeStruct((n_pad, out_pad), jnp.float32),
        grid_spec=pltpu.PrefetchScalarGridSpec(
            num_scalar_prefetch=0,
            grid=grid,
            in_specs=[
                pl.BlockSpec((tm, tk), lambda i, k: (i, k)),            # A tile
                pl.BlockSpec((tk, in_pad), lambda i, k: (k, 0)),        # neighbor X (bf16)
                pl.BlockSpec((tm, in_pad), lambda i, k: (i, 0)),        # self X (f32)
                pl.BlockSpec((in_pad, out_pad), lambda i, k: (0, 0)),   # W_l
                pl.BlockSpec((in_pad, out_pad), lambda i, k: (0, 0)),   # W_r
                pl.BlockSpec((1, out_pad), lambda i, k: (0, 0)),        # bias
            ],
            out_specs=pl.BlockSpec((tm, out_pad), lambda i, k: (i, 0)),
            scratch_shapes=[pltpu.VMEM((tm, in_pad), jnp.float32)],
        ),
        compiler_params=pltpu.CompilerParams(
            dimension_semantics=("parallel", "arbitrary"),
            vmem_limit_bytes=64 * 1024 * 1024,
        ),
    )(adj_p, x_nbr, x_self, wl_p, wr_p, b_p)

    # slice off node / feature padding (padded weight rows/cols are zero, so no leakage)
    return out_p[:n, :out_dim]


if __name__ == "__main__":
    N, IN_DIM, OUT_DIM, E = 16, 8, 16, 48

    key = jax.random.PRNGKey(0)
    k_x, k_e0, k_e1, k_wl, k_wr, k_b = jax.random.split(key, 6)

    # node features
    x = jax.random.normal(k_x, (N, IN_DIM), dtype=jnp.float32)

    # random directed edges (src row 0, dst row 1), plus a ring so every node has a neighbor
    rand_src = jax.random.randint(k_e0, (E,), 0, N, dtype=jnp.int32)
    rand_dst = jax.random.randint(k_e1, (E,), 0, N, dtype=jnp.int32)
    ring_src = jnp.arange(N, dtype=jnp.int32)
    ring_dst = (ring_src + 1) % N
    edge_index = jnp.stack(
        [jnp.concatenate([rand_src, ring_src]), jnp.concatenate([rand_dst, ring_dst])],
        axis=0,
    )

    # SAGEConv params: lin_l (neighbors, has bias), lin_r (root, no bias)
    w_l = jax.random.normal(k_wl, (IN_DIM, OUT_DIM), dtype=jnp.float32) * (1.0 / jnp.sqrt(IN_DIM))
    w_r = jax.random.normal(k_wr, (IN_DIM, OUT_DIM), dtype=jnp.float32) * (1.0 / jnp.sqrt(IN_DIM))
    bias = jax.random.normal(k_b, (OUT_DIM,), dtype=jnp.float32) * 0.01

    out = graphsage_forward(x, edge_index, w_l, w_r, bias)
    out = jax.block_until_ready(out)

    # pure-JAX f32 reference
    src, dst = edge_index[0], edge_index[1]
    adj_ref = jnp.zeros((N, N), jnp.float32).at[dst, src].add(1.0)
    deg_ref = jnp.maximum(adj_ref.sum(axis=1, keepdims=True), 1.0)
    ref = jnp.maximum((adj_ref / deg_ref) @ x @ w_l + x @ w_r + bias[None, :], 0.0)

    assert out.shape == (N, OUT_DIM)
    assert bool(jnp.all(jnp.isfinite(out)))
    assert bool(jnp.all(out >= 0.0))
    # bf16 adjacency/neighbor features in the aggregation path -> loose tolerance
    assert bool(jnp.allclose(out, ref, rtol=3e-2, atol=3e-2)), float(jnp.max(jnp.abs(out - ref)))

    print("KERNEL_OK")
</pallas_src>

<mosaic_0001>
module attributes {stable_mosaic.version = 11 : i64} {
  func.func @sage_kernel(%arg0: i32, %arg1: i32, %arg2: memref<128x128xbf16, #tpu.memory_space<vmem>>, %arg3: memref<128x128xbf16, #tpu.memory_space<vmem>>, %arg4: memref<128x128xf32, #tpu.memory_space<vmem>>, %arg5: memref<128x128xf32, #tpu.memory_space<vmem>>, %arg6: memref<128x128xf32, #tpu.memory_space<vmem>>, %arg7: memref<1x128xf32, #tpu.memory_space<vmem>>, %arg8: memref<128x128xf32, #tpu.memory_space<vmem>>, %arg9: memref<128x128xf32, #tpu.memory_space<vmem>>) attributes {dimension_semantics = [#tpu.dimension_semantics<parallel>, #tpu.dimension_semantics<arbitrary>], iteration_bounds = array<i64: 1, 1>, scalar_prefetch = 0 : i64, scratch_operands = 1 : i64, tpu.core_type = #tpu.core_type<tc>, window_params = [{transform_indices = @transform_0, window_bounds = array<i64: 128, 128>}, {transform_indices = @transform_1, window_bounds = array<i64: 128, 128>}, {transform_indices = @transform_2, window_bounds = array<i64: 128, 128>}, {pipeline_mode = #tpu.pipeline_mode<synchronous>, transform_indices = @transform_3, window_bounds = array<i64: 128, 128>}, {pipeline_mode = #tpu.pipeline_mode<synchronous>, transform_indices = @transform_4, window_bounds = array<i64: 128, 128>}, {pipeline_mode = #tpu.pipeline_mode<synchronous>, transform_indices = @transform_5, window_bounds = array<i64: 1, 128>}, {transform_indices = @transform_6, window_bounds = array<i64: 128, 128>}]} {
    %c0_i32 = arith.constant 0 : i32
    %0 = arith.cmpi eq, %arg1, %c0_i32 : i32
    %1 = arith.extui %0 : i1 to i32
    %c0_i32_0 = arith.constant 0 : i32
    %2 = arith.cmpi ne, %1, %c0_i32_0 : i32
    scf.if %2 {
      %cst_10 = arith.constant 0.000000e+00 : f32
      %12 = vector.broadcast %cst_10 : f32 to vector<128x128xf32>
      %c0_11 = arith.constant 0 : index
      %c0_12 = arith.constant 0 : index
      %13 = vector.load %arg9[%c0_11, %c0_12] : memref<128x128xf32, #tpu.memory_space<vmem>>, vector<128x128xf32>
      tpu.vector_store %arg9[%c0_11, %c0_12], %12 {strides = array<i32>} : memref<128x128xf32, #tpu.memory_space<vmem>>, vector<128x128xf32>,
    } else {
    }
    %c0 = arith.constant 0 : index
    %c0_1 = arith.constant 0 : index
    %3 = vector.load %arg9[%c0, %c0_1] : memref<128x128xf32, #tpu.memory_space<vmem>>, vector<128x128xf32>
    %c0_2 = arith.constant 0 : index
    %c0_3 = arith.constant 0 : index
    %4 = vector.load %arg2[%c0_2, %c0_3] : memref<128x128xbf16, #tpu.memory_space<vmem>>, vector<128x128xbf16>
    %c0_4 = arith.constant 0 : index
    %c0_5 = arith.constant 0 : index
    %5 = vector.load %arg3[%c0_4, %c0_5] : memref<128x128xbf16, #tpu.memory_space<vmem>>, vector<128x128xbf16>
    %cst = arith.constant dense<0.000000e+00> : vector<128x128xf32>
    %6 = tpu.matmul %4, %5, %cst {dimension_numbers = #tpu.dot_dimension_numbers<[1], [0], [0], [1], [0, 0, 1, 1], [], []>} : vector<128x128xbf16>, vector<128x128xbf16>, vector<128x128xf32> -> vector<128x128xf32>
    %7 = arith.addf %3, %6 : vector<128x128xf32>
    %c0_6 = arith.constant 0 : index
    %c0_7 = arith.constant 0 : index
    %8 = vector.load %arg9[%c0_6, %c0_7] : memref<128x128xf32, #tpu.memory_space<vmem>>, vector<128x128xf32>
    tpu.vector_store %arg9[%c0_6, %c0_7], %7 {strides = array<i32>} : memref<128x128xf32, #tpu.memory_space<vmem>>, vector<128x128xf32>,
    %c0_i32_8 = arith.constant 0 : i32
    %9 = arith.cmpi eq, %arg1, %c0_i32_8 : i32
    %10 = arith.extui %9 : i1 to i32
    %c0_i32_9 = arith.constant 0 : i32
    %11 = arith.cmpi ne, %10, %c0_i32_9 : i32
    scf.if %11 {
      %c0_10 = arith.constant 0 : index
      %c0_11 = arith.constant 0 : index
      %12 = vector.load %arg9[%c0_10, %c0_11] : memref<128x128xf32, #tpu.memory_space<vmem>>, vector<128x128xf32>
      %c0_12 = arith.constant 0 : index
      %c0_13 = arith.constant 0 : index
      %13 = vector.load %arg5[%c0_12, %c0_13] : memref<128x128xf32, #tpu.memory_space<vmem>>, vector<128x128xf32>
      %cst_14 = arith.constant dense<0.000000e+00> : vector<128x128xf32>
      %14 = tpu.matmul %12, %13, %cst_14 {dimension_numbers = #tpu.dot_dimension_numbers<[1], [0], [0], [1], [0, 0, 1, 1], [], []>} : vector<128x128xf32>, vector<128x128xf32>, vector<128x128xf32> -> vector<128x128xf32>
      %c0_15 = arith.constant 0 : index
      %c0_16 = arith.constant 0 : index
      %15 = vector.load %arg4[%c0_15, %c0_16] : memref<128x128xf32, #tpu.memory_space<vmem>>, vector<128x128xf32>
      %c0_17 = arith.constant 0 : index
      %c0_18 = arith.constant 0 : index
      %16 = vector.load %arg6[%c0_17, %c0_18] : memref<128x128xf32, #tpu.memory_space<vmem>>, vector<128x128xf32>
      %cst_19 = arith.constant dense<0.000000e+00> : vector<128x128xf32>
      %17 = tpu.matmul %15, %16, %cst_19 {dimension_numbers = #tpu.dot_dimension_numbers<[1], [0], [0], [1], [0, 0, 1, 1], [], []>} : vector<128x128xf32>, vector<128x128xf32>, vector<128x128xf32> -> vector<128x128xf32>
      %18 = arith.addf %14, %17 : vector<128x128xf32>
      %c0_20 = arith.constant 0 : index
      %c0_21 = arith.constant 0 : index
      %19 = vector.load %arg7[%c0_20, %c0_21] : memref<1x128xf32, #tpu.memory_space<vmem>>, vector<1x128xf32>
      %20 = vector.broadcast %19 : vector<1x128xf32> to vector<128x128xf32>
      %21 = arith.addf %18, %20 : vector<128x128xf32>
      %cst_22 = arith.constant 0.000000e+00 : f32
      %22 = vector.broadcast %cst_22 : f32 to vector<128x128xf32>
      %23 = arith.maximumf %21, %22 : vector<128x128xf32>
      %c0_23 = arith.constant 0 : index
      %c0_24 = arith.constant 0 : index
      %24 = vector.load %arg8[%c0_23, %c0_24] : memref<128x128xf32, #tpu.memory_space<vmem>>, vector<128x128xf32>
      tpu.vector_store %arg8[%c0_23, %c0_24], %23 {strides = array<i32>} : memref<128x128xf32, #tpu.memory_space<vmem>>, vector<128x128xf32>,
    } else {
    }
    return
  }
  func.func @transform_0(%arg0: i32, %arg1: i32) -> (i32, i32) {
    %c0_i32 = arith.constant 0 : i32
    return %arg0, %arg1 : i32, i32
  }
  func.func @transform_1(%arg0: i32, %arg1: i32) -> (i32, i32) {
    %c0_i32 = arith.constant 0 : i32
    %c0_i32_0 = arith.constant 0 : i32
    return %arg1, %c0_i32 : i32, i32
  }
  func.func @transform_2(%arg0: i32, %arg1: i32) -> (i32, i32) {
    %c0_i32 = arith.constant 0 : i32
    %c0_i32_0 = arith.constant 0 : i32
    return %arg0, %c0_i32 : i32, i32
  }
  func.func @transform_3(%arg0: i32, %arg1: i32) -> (i32, i32) {
    %c0_i32 = arith.constant 0 : i32
    %c0_i32_0 = arith.constant 0 : i32
    %c0_i32_1 = arith.constant 0 : i32
    return %c0_i32, %c0_i32_0 : i32, i32
  }
  func.func @transform_4(%arg0: i32, %arg1: i32) -> (i32, i32) {
    %c0_i32 = arith.constant 0 : i32
    %c0_i32_0 = arith.constant 0 : i32
    %c0_i32_1 = arith.constant 0 : i32
    return %c0_i32, %c0_i32_0 : i32, i32
  }
  func.func @transform_5(%arg0: i32, %arg1: i32) -> (i32, i32) {
    %c0_i32 = arith.constant 0 : i32
    %c0_i32_0 = arith.constant 0 : i32
    %c0_i32_1 = arith.constant 0 : i32
    return %c0_i32, %c0_i32_0 : i32, i32
  }
  func.func @transform_6(%arg0: i32, %arg1: i32) -> (i32, i32) {
    %c0_i32 = arith.constant 0 : i32
    %c0_i32_0 = arith.constant 0 : i32
    return %arg0, %c0_i32 : i32, i32
  }
}

</mosaic_0001>

<llo_original>
// kernel: tpu_custom_call.1
$region0: #{tpu_custom_call.1}
  #allocation0 [shape = 'u32[]', space=smem, size = 0x4, offset = 0x4, fixed_abs, tag = 'smem constant byte address 0x4 - core index']
  #allocation1 [shape = 'u32[144,128]{1,0:T(1,128)}', space=vmem, size = 0x12000, scoped, tag = 'internal scratch']
  #allocation2 [shape = 'f32[128,128]{1,0:T(8,128)}', space=vmem, size = 0x10000, scoped, tag = 'scratch operand']
  %s0 = inlined_call_operand.hbm [shape: bf16[128,128], index: 0, kind: input, shape index: {}]
  %s1 = inlined_call_operand.hbm [shape: bf16[128,128], index: 1, kind: input, shape index: {}]
  %s2 = inlined_call_operand.hbm [shape: f32[128,128], index: 2, kind: input, shape index: {}]
  %s3 = inlined_call_operand.hbm [shape: f32[128,128], index: 3, kind: input, shape index: {}]
  %s4 = inlined_call_operand.hbm [shape: f32[128,128], index: 4, kind: input, shape index: {}]
  %s5 = inlined_call_operand.vmem [shape: f32[1,128], index: 5, kind: input, shape index: {}]
  %s6 = inlined_call_operand.hbm [shape: f32[128,128], index: 6, kind: output, shape index: {}]
  %s7 = sld [smem:[#allocation0]]
  $region62: #{tpu_custom_call.1} parent=0
    _
  %s9 = ssub.s32 1, %s7
  %s10 = scalar_select 0, %s9, %s7
  $region1: #{tpu_custom_call.1} parent=0
    #allocation3 [shape = 'u8[32768]{0}', space=vmem, size = 0x8000, scoped, tag = 'input window, operand 0, single buffered']
    #allocation4 [shape = 's32[1]{0}', space=sflag, size = 0x4, scoped, tag = 'scoped memory for tpu_custom_call.1']
    #allocation5 [shape = 's32[1]{0}', space=sflag, size = 0x4, scoped, tag = 'scoped memory for tpu_custom_call.1']
    #allocation6 [shape = 'u8[32768]{0}', space=vmem, size = 0x8000, scoped, tag = 'input window, operand 1, single buffered']
    #allocation7 [shape = 's32[1]{0}', space=sflag, size = 0x4, scoped, tag = 'scoped memory for tpu_custom_call.1']
    #allocation8 [shape = 'u8[65536]{0}', space=vmem, size = 0x10000, scoped, tag = 'input window, operand 2, single buffered']
    #allocation9 [shape = 'u8[65536]{0}', space=vmem, size = 0x10000, scoped, tag = 'input window, operand 3, single buffered']
    #allocation10 [shape = 's32[1]{0}', space=sflag, size = 0x4, scoped, tag = 'scoped memory for tpu_custom_call.1']
    #allocation11 [shape = 'u8[65536]{0}', space=vmem, size = 0x10000, scoped, tag = 'input window, operand 4, single buffered']
    #allocation12 [shape = 'u8[65536]{0}', space=vmem, size = 0x10000, scoped, tag = 'output window, operand 0, single buffered']
    %11 = vsyncpa [#allocation4], 0
    %12 = vsyncpa [#allocation7], 0
    %13 = vsyncpa [#allocation10], 0
    %14 = vsyncpa [#allocation5], 0
    // Predicated region
    $region2: #{tpu_custom_call.1} parent=1 // pred_check
      _
    $region3: #{tpu_custom_call.1} parent=1 // pred_check_branch
      %16 = sbr.rel (0) target = $region5
    $region4: #{tpu_custom_call.1} parent=1 // pred_region
      %s18 = ssub.s32 1024, 1024
      %19 = vsyncadd [#allocation4], %s18
      %s20 = sshll.u32 [#allocation3], 4
      %s21 = int_to_ptr.vmem [resolvable:$true] %s20
      %26 = dma.hbm_to_vmem [thread:$0]  %s0, 1024, %s21, [#allocation4], 64, 64, 4
    $region5: #{tpu_custom_call.1} parent=1 // pred_fallthru
      _
    // Predicated region
    $region6: #{tpu_custom_call.1} parent=1 // pred_check
      _
    $region7: #{tpu_custom_call.1} parent=1 // pred_check_branch
      %28 = sbr.rel (0) target = $region9
    $region8: #{tpu_custom_call.1} parent=1 // pred_region
      %s30 = ssub.s32 1024, 1024
      %31 = vsyncadd [#allocation7], %s30
      %s32 = sshll.u32 [#allocation6], 4
      %s33 = int_to_ptr.vmem [resolvable:$true] %s32
      %38 = dma.hbm_to_vmem [thread:$0]  %s1, 1024, %s33, [#allocation7], 64, 64, 4
    $region9: #{tpu_custom_call.1} parent=1 // pred_fallthru
      _
    // Predicated region
    $region10: #{tpu_custom_call.1} parent=1 // pred_check
      _
    $region11: #{tpu_custom_call.1} parent=1 // pred_check_branch
      %40 = sbr.rel (0) target = $region13
    $region12: #{tpu_custom_call.1} parent=1 // pred_region
      %s42 = ssub.s32 2048, 2048
      %43 = vsyncadd [#allocation7], %s42
      %s44 = sshll.u32 [#allocation8], 4
      %s45 = int_to_ptr.vmem [resolvable:$true] %s44
      %50 = dma.hbm_to_vmem [thread:$0]  %s2, 2048, %s45, [#allocation7], 128, 128, 8
    $region13: #{tpu_custom_call.1} parent=1 // pred_fallthru
      _
    // Predicated region
    $region14: #{tpu_custom_call.1} parent=1 // pred_check
      _
    $region15: #{tpu_custom_call.1} parent=1 // pred_check_branch
      %52 = sbr.rel (0) target = $region17
    $region16: #{tpu_custom_call.1} parent=1 // pred_region
      %s54 = ssub.s32 2048, 2048
      %55 = vsyncadd [#allocation10], %s54
      %s56 = sshll.u32 [#allocation9], 4
      %s57 = int_to_ptr.vmem [resolvable:$true] %s56
      %62 = dma.hbm_to_vmem [thread:$0]  %s3, 2048, %s57, [#allocation10], 128, 128, 8
    $region17: #{tpu_custom_call.1} parent=1 // pred_fallthru
      _
    // Predicated region
    $region18: #{tpu_custom_call.1} parent=1 // pred_check
      _
    $region19: #{tpu_custom_call.1} parent=1 // pred_check_branch
      %64 = sbr.rel (0) target = $region21
    $region20: #{tpu_custom_call.1} parent=1 // pred_region
      %s66 = ssub.s32 2048, 2048
      %67 = vsyncadd [#allocation10], %s66
      %s68 = sshll.u32 [#allocation11], 4
      %s69 = int_to_ptr.vmem [resolvable:$true] %s68
      %74 = dma.hbm_to_vmem [thread:$0]  %s4, 2048, %s69, [#allocation10], 128, 128, 8
    $region21: #{tpu_custom_call.1} parent=1 // pred_fallthru
      _
    // Predicated region
    $region22: #{tpu_custom_call.1} parent=1 // pred_check
      _
    $region23: #{tpu_custom_call.1} parent=1 // pred_check_branch
      %76 = sbr.rel (0) target = $region25
    $region24: #{tpu_custom_call.1} parent=1 // pred_region
      _
    $region25: #{tpu_custom_call.1} parent=1 // pred_fallthru
      _
    // Predicated region
    $region26: #{tpu_custom_call.1} parent=1 // pred_check
      _
    $region27: #{tpu_custom_call.1} parent=1 // pred_check_branch
      %78 = sbr.rel (0) target = $region29
    $region28: #{tpu_custom_call.1} parent=1 // pred_region
      %79 = dma.done [#allocation4], 1024
    $region29: #{tpu_custom_call.1} parent=1 // pred_fallthru
      _
    // Predicated region
    $region30: #{tpu_custom_call.1} parent=1 // pred_check
      _
    $region31: #{tpu_custom_call.1} parent=1 // pred_check_branch
      %81 = sbr.rel (0) target = $region33
    $region32: #{tpu_custom_call.1} parent=1 // pred_region
      %82 = dma.done [#allocation7], 1024
    $region33: #{tpu_custom_call.1} parent=1 // pred_fallthru
      _
    // Predicated region
    $region34: #{tpu_custom_call.1} parent=1 // pred_check
      _
    $region35: #{tpu_custom_call.1} parent=1 // pred_check_branch
      %84 = sbr.rel (0) target = $region37
    $region36: #{tpu_custom_call.1} parent=1 // pred_region
      %85 = dma.done [#allocation7], 2048
    $region37: #{tpu_custom_call.1} parent=1 // pred_fallthru
      _
    // Predicated region
    $region38: #{tpu_custom_call.1} parent=1 // pred_check
      _
    $region39: #{tpu_custom_call.1} parent=1 // pred_check_branch
      %87 = sbr.rel (0) target = $region41
    $region40: #{tpu_custom_call.1} parent=1 // pred_region
      %88 = dma.done [#allocation10], 2048
    $region41: #{tpu_custom_call.1} parent=1 // pred_fallthru
      _
    // Predicated region
    $region42: #{tpu_custom_call.1} parent=1 // pred_check
      _
    $region43: #{tpu_custom_call.1} parent=1 // pred_check_branch
      %90 = sbr.rel (0) target = $region45
    $region44: #{tpu_custom_call.1} parent=1 // pred_region
      %91 = dma.done [#allocation10], 2048
    $region45: #{tpu_custom_call.1} parent=1 // pred_fallthru
      _
    %p93 = scmp.eq.s32.totalorder 0, 0
    // Predicated region
    $region46: #{tpu_custom_call.1} parent=1 // pred_check
      %p94 = pneg %p93
    $region47: #{tpu_custom_call.1} parent=1 // pred_check_branch
      %96 = sbr.rel (%p94) target = $region49
    $region48: #{tpu_custom_call.1} parent=1 // pred_region
      %97 = vst [vmem:[#allocation2] sm:$0xff] 0.0
      %98 = vst [vmem:[#allocation2 + $0x8] sm:$0xff] 0.0
      %99 = vst [vmem:[#allocation2 + $0x10] sm:$0xff] 0.0
      %100 = vst [vmem:[#allocation2 + $0x18] sm:$0xff] 0.0
      %101 = vst [vmem:[#allocation2 + $0x20] sm:$0xff] 0.0
      %102 = vst [vmem:[#allocation2 + $0x28] sm:$0xff] 0.0
      %103 = vst [vmem:[#allocation2 + $0x30] sm:$0xff] 0.0
      %104 = vst [vmem:[#allocation2 + $0x38] sm:$0xff] 0.0
      %105 = vst [vmem:[#allocation2 + $0x40] sm:$0xff] 0.0
      %106 = vst [vmem:[#allocation2 + $0x48] sm:$0xff] 0.0
      %107 = vst [vmem:[#allocation2 + $0x50] sm:$0xff] 0.0
      %108 = vst [vmem:[#allocation2 + $0x58] sm:$0xff] 0.0
      %109 = vst [vmem:[#allocation2 + $0x60] sm:$0xff] 0.0
      %110 = vst [vmem:[#allocation2 + $0x68] sm:$0xff] 0.0
      %111 = vst [vmem:[#allocation2 + $0x70] sm:$0xff] 0.0
      %112 = vst [vmem:[#allocation2 + $0x78] sm:$0xff] 0.0
    $region49: #{tpu_custom_call.1} parent=1 // pred_fallthru
      _
    %v113 = vld [vmem:[#allocation2] sm:$0xff]
    %v114 = vld [vmem:[#allocation2 + $0x8] sm:$0xff]
    %v115 = vld [vmem:[#allocation2 + $0x10] sm:$0xff]
    %v116 = vld [vmem:[#allocation2 + $0x18] sm:$0xff]
    %v117 = vld [vmem:[#allocation2 + $0x20] sm:$0xff]
    %v118 = vld [vmem:[#allocation2 + $0x28] sm:$0xff]
    %v119 = vld [vmem:[#allocation2 + $0x30] sm:$0xff]
    %v120 = vld [vmem:[#allocation2 + $0x38] sm:$0xff]
    %v121 = vld [vmem:[#allocation2 + $0x40] sm:$0xff]
    %v122 = vld [vmem:[#allocation2 + $0x48] sm:$0xff]
    %v123 = vld [vmem:[#allocation2 + $0x50] sm:$0xff]
    %v124 = vld [vmem:[#allocation2 + $0x58] sm:$0xff]
    %v125 = vld [vmem:[#allocation2 + $0x60] sm:$0xff]
    %v126 = vld [vmem:[#allocation2 + $0x68] sm:$0xff]
    %v127 = vld [vmem:[#allocation2 + $0x70] sm:$0xff]
    %v128 = vld [vmem:[#allocation2 + $0x78] sm:$0xff]
    %v129 = vld [vmem:[#allocation3] sm:$0xf]
    %v130 = vld [vmem:[#allocation3 + $0x4] sm:$0xf]
    %v131 = vld [vmem:[#allocation3 + $0x8] sm:$0xf]
    %v132 = vld [vmem:[#allocation3 + $0xc] sm:$0xf]
    %v133 = vld [vmem:[#allocation3 + $0x10] sm:$0xf]
    %v134 = vld [vmem:[#allocation3 + $0x14] sm:$0xf]
    %v135 = vld [vmem:[#allocation3 + $0x18] sm:$0xf]
    %v136 = vld [vmem:[#allocation3 + $0x1c] sm:$0xf]
    %v137 = vld [vmem:[#allocation3 + $0x20] sm:$0xf]
    %v138 = vld [vmem:[#allocation3 + $0x24] sm:$0xf]
    %v139 = vld [vmem:[#allocation3 + $0x28] sm:$0xf]
    %v140 = vld [vmem:[#allocation3 + $0x2c] sm:$0xf]
    %v141 = vld [vmem:[#allocation3 + $0x30] sm:$0xf]
    %v142 = vld [vmem:[#allocation3 + $0x34] sm:$0xf]
    %v143 = vld [vmem:[#allocation3 + $0x38] sm:$0xf]
    %v144 = vld [vmem:[#allocation3 + $0x3c] sm:$0xf]
    %v145 = vld [vmem:[#allocation6] sm:$0xf]
    %v146 = vld [vmem:[#allocation6 + $0x4] sm:$0xf]
    %v147 = vld [vmem:[#allocation6 + $0x8] sm:$0xf]
    %v148 = vld [vmem:[#allocation6 + $0xc] sm:$0xf]
    %v149 = vld [vmem:[#allocation6 + $0x10] sm:$0xf]
    %v150 = vld [vmem:[#allocation6 + $0x14] sm:$0xf]
    %v151 = vld [vmem:[#allocation6 + $0x18] sm:$0xf]
    %v152 = vld [vmem:[#allocation6 + $0x1c] sm:$0xf]
    %v153 = vld [vmem:[#allocation6 + $0x20] sm:$0xf]
    %v154 = vld [vmem:[#allocation6 + $0x24] sm:$0xf]
    %v155 = vld [vmem:[#allocation6 + $0x28] sm:$0xf]
    %v156 = vld [vmem:[#allocation6 + $0x2c] sm:$0xf]
    %v157 = vld [vmem:[#allocation6 + $0x30] sm:$0xf]
    %v158 = vld [vmem:[#allocation6 + $0x34] sm:$0xf]
    %v159 = vld [vmem:[#allocation6 + $0x38] sm:$0xf]
    %v160 = vld [vmem:[#allocation6 + $0x3c] sm:$0xf]
    %v177 = vunpack.c.l.b16 %v129
    %v178 = vunpack.c.l.b16 %v130
    %v179 = vunpack.c.l.b16 %v131
    %v180 = vunpack.c.l.b16 %v132
    %v181 = vunpack.c.l.b16 %v133
    %v182 = vunpack.c.l.b16 %v134
    %v183 = vunpack.c.l.b16 %v135
    %v184 = vunpack.c.l.b16 %v136
    %v185 = vunpack.c.l.b16 %v137
    %v186 = vunpack.c.l.b16 %v138
    %v187 = vunpack.c.l.b16 %v139
    %v188 = vunpack.c.l.b16 %v140
    %v189 = vunpack.c.l.b16 %v141
    %v190 = vunpack.c.l.b16 %v142
    %v191 = vunpack.c.l.b16 %v143
    %v192 = vunpack.c.l.b16 %v144
    %v193 = vpack.c.b16 %v178, %v177
    %v194 = vpack.c.b16 %v180, %v179
    %v195 = vpack.c.b16 %v182, %v181
    %v196 = vpack.c.b16 %v184, %v183
    %v197 = vpack.c.b16 %v186, %v185
    %v198 = vpack.c.b16 %v188, %v187
    %v199 = vpack.c.b16 %v190, %v189
    %v200 = vpack.c.b16 %v192, %v191
    %v225 = vunpack.c.l.b16 %v145
    %v226 = vunpack.c.l.b16 %v146
    %v227 = vunpack.c.l.b16 %v147
    %v228 = vunpack.c.l.b16 %v148
    %v229 = vunpack.c.l.b16 %v149
    %v230 = vunpack.c.l.b16 %v150
    %v231 = vunpack.c.l.b16 %v151
    %v232 = vunpack.c.l.b16 %v152
    %v233 = vunpack.c.l.b16 %v153
    %v234 = vunpack.c.l.b16 %v154
    %v235 = vunpack.c.l.b16 %v155
    %v236 = vunpack.c.l.b16 %v156
    %v237 = vunpack.c.l.b16 %v157
    %v238 = vunpack.c.l.b16 %v158
    %v239 = vunpack.c.l.b16 %v159
    %v240 = vunpack.c.l.b16 %v160
    %v241 = vpack.c.b16 %v226, %v225
    %v242 = vpack.c.b16 %v228, %v227
    %v243 = vpack.c.b16 %v230, %v229
    %v244 = vpack.c.b16 %v232, %v231
    %v245 = vpack.c.b16 %v234, %v233
    %v246 = vpack.c.b16 %v236, %v235
    %v247 = vpack.c.b16 %v238, %v237
    %v248 = vpack.c.b16 %v240, %v239
    %257 = vmatprep.subr.bf16.mxu0 0
    %258 = vmatpush1.bf16.msra.mxu0 %v248
    %259 = vmatprep.subr.bf16.mxu0 0
    %260 = vmatpush1.bf16.msra.mxu0 %v247
    %261 = vmatprep.subr.bf16.mxu0 0
    %262 = vmatpush1.bf16.msra.mxu0 %v246
    %263 = vmatprep.subr.bf16.mxu0 0
    %264 = vmatpush1.bf16.msra.mxu0 %v245
    %265 = vmatprep.subr.bf16.mxu0 0
    %266 = vmatpush1.bf16.msra.mxu0 %v244
    %267 = vmatprep.subr.bf16.mxu0 0
    %268 = vmatpush1.bf16.msra.mxu0 %v243
    %269 = vmatprep.subr.bf16.mxu0 0
    %270 = vmatpush1.bf16.msra.mxu0 %v242
    %271 = vmatprep.subr.bf16.mxu0 0
    %272 = vmatpush1.bf16.msra.mxu0 %v241
    %273 = vmatprep.subr.bf16.mxu0 0
    %274 = vmatpush2.bf16.msra.mxu0 0
    %275 = vmatprep.subr.bf16.mxu0 0
    %276 = vmatpush2.bf16.msra.mxu0 0
    %277 = vmatprep.subr.bf16.mxu0 0
    %278 = vmatpush2.bf16.msra.mxu0 0
    %279 = vmatprep.subr.bf16.mxu0 0
    %280 = vmatpush2.bf16.msra.mxu0 0
    %281 = vmatprep.subr.bf16.mxu0 0
    %282 = vmatpush2.bf16.msra.mxu0 0
    %283 = vmatprep.subr.bf16.mxu0 0
    %284 = vmatpush2.bf16.msra.mxu0 0
    %285 = vmatprep.subr.bf16.mxu0 0
    %286 = vmatpush2.bf16.msra.mxu0 0
    %287 = vmatprep.subr.bf16.mxu0 0
    %288 = vmatpush2.bf16.msra.mxu0 0
    %289 = vmatprep.mubr.bf16.mxu0 0
    %290 = vmatmul.mubr.bf16.gmra.mxu0 %v193
    %v291 = vpop.f32.mrf.mxu0
    %v292 = vadd.f32 0.0, %v291
    %v293 = vpop.f32.mrf.mxu0
    %v294 = vpop.f32.mrf.mxu0
    %v295 = vadd.f32 0.0, %v294
    %v296 = vpop.f32.mrf.mxu0
    %297 = vmatprep.mubr.bf16.mxu0 0
    %298 = vmatmul.mubr.bf16.gmra.mxu0 %v194
    %v299 = vpop.f32.mrf.mxu0
    %v300 = vadd.f32 0.0, %v299
    %v301 = vpop.f32.mrf.mxu0
    %v302 = vpop.f32.mrf.mxu0
    %v303 = vadd.f32 0.0, %v302
    %v304 = vpop.f32.mrf.mxu0
    %305 = vmatprep.mubr.bf16.mxu0 0
    %306 = vmatmul.mubr.bf16.gmra.mxu0 %v195
    %v307 = vpop.f32.mrf.mxu0
    %v308 = vadd.f32 0.0, %v307
    %v309 = vpop.f32.mrf.mxu0
    %v310 = vpop.f32.mrf.mxu0
    %v311 = vadd.f32 0.0, %v310
    %v312 = vpop.f32.mrf.mxu0
    %313 = vmatprep.mubr.bf16.mxu0 0
    %314 = vmatmul.mubr.bf16.gmra.mxu0 %v196
    %v315 = vpop.f32.mrf.mxu0
    %v316 = vadd.f32 0.0, %v315
    %v317 = vpop.f32.mrf.mxu0
    %v318 = vpop.f32.mrf.mxu0
    %v319 = vadd.f32 0.0, %v318
    %v320 = vpop.f32.mrf.mxu0
    %321 = vmatprep.mubr.bf16.mxu0 0
    %322 = vmatmul.mubr.bf16.gmra.mxu0 %v197
    %v323 = vpop.f32.mrf.mxu0
    %v324 = vadd.f32 0.0, %v323
    %v325 = vpop.f32.mrf.mxu0
    %v326 = vpop.f32.mrf.mxu0
    %v327 = vadd.f32 0.0, %v326
    %v328 = vpop.f32.mrf.mxu0
    %329 = vmatprep.mubr.bf16.mxu0 0
    %330 = vmatmul.mubr.bf16.gmra.mxu0 %v198
    %v331 = vpop.f32.mrf.mxu0
    %v332 = vadd.f32 0.0, %v331
    %v333 = vpop.f32.mrf.mxu0
    %v334 = vpop.f32.mrf.mxu0
    %v335 = vadd.f32 0.0, %v334
    %v336 = vpop.f32.mrf.mxu0
    %337 = vmatprep.mubr.bf16.mxu0 0
    %338 = vmatmul.mubr.bf16.gmra.mxu0 %v199
    %v339 = vpop.f32.mrf.mxu0
    %v340 = vadd.f32 0.0, %v339
    %v341 = vpop.f32.mrf.mxu0
    %v342 = vpop.f32.mrf.mxu0
    %v343 = vadd.f32 0.0, %v342
    %v344 = vpop.f32.mrf.mxu0
    %345 = vmatprep.mubr.bf16.mxu0 0
    %346 = vmatmul.mubr.bf16.gmra.mxu0 %v200
    %v347 = vpop.f32.mrf.mxu0
    %v348 = vadd.f32 0.0, %v347
    %v349 = vpop.f32.mrf.mxu0
    %v350 = vpop.f32.mrf.mxu0
    %v351 = vadd.f32 0.0, %v350
    %v352 = vpop.f32.mrf.mxu0
    %353 = vdwg.mxu0
    %v354 = vadd.f32 %v113, %v292
    %v355 = vadd.f32 %v114, %v295
    %v356 = vadd.f32 %v115, %v300
    %v357 = vadd.f32 %v116, %v303
    %v358 = vadd.f32 %v117, %v308
    %v359 = vadd.f32 %v118, %v311
    %v360 = vadd.f32 %v119, %v316
    %v361 = vadd.f32 %v120, %v319
    %v362 = vadd.f32 %v121, %v324
    %v363 = vadd.f32 %v122, %v327
    %v364 = vadd.f32 %v123, %v332
    %v365 = vadd.f32 %v124, %v335
    %v366 = vadd.f32 %v125, %v340
    %v367 = vadd.f32 %v126, %v343
    %v368 = vadd.f32 %v127, %v348
    %v369 = vadd.f32 %v128, %v351
    %370 = vst [vmem:[#allocation2] sm:$0xff] %v354
    %371 = vst [vmem:[#allocation2 + $0x8] sm:$0xff] %v355
    %372 = vst [vmem:[#allocation2 + $0x10] sm:$0xff] %v356
    %373 = vst [vmem:[#allocation2 + $0x18] sm:$0xff] %v357
    %374 = vst [vmem:[#allocation2 + $0x20] sm:$0xff] %v358
    %375 = vst [vmem:[#allocation2 + $0x28] sm:$0xff] %v359
    %376 = vst [vmem:[#allocation2 + $0x30] sm:$0xff] %v360
    %377 = vst [vmem:[#allocation2 + $0x38] sm:$0xff] %v361
    %378 = vst [vmem:[#allocation2 + $0x40] sm:$0xff] %v362
    %379 = vst [vmem:[#allocation2 + $0x48] sm:$0xff] %v363
    %380 = vst [vmem:[#allocation2 + $0x50] sm:$0xff] %v364
    %381 = vst [vmem:[#allocation2 + $0x58] sm:$0xff] %v365
    %382 = vst [vmem:[#allocation2 + $0x60] sm:$0xff] %v366
    %383 = vst [vmem:[#allocation2 + $0x68] sm:$0xff] %v367
    %384 = vst [vmem:[#allocation2 + $0x70] sm:$0xff] %v368
    %385 = vst [vmem:[#allocation2 + $0x78] sm:$0xff] %v369
    // Predicated region
    $region50: #{tpu_custom_call.1} parent=1 // pred_check
      %p386 = pneg %p93
    $region51: #{tpu_custom_call.1} parent=1 // pred_check_branch
      %388 = sbr.rel (%p386) target = $region53
    $region52: #{tpu_custom_call.1} parent=1 // pred_region
      %v389 = vld [vmem:[#allocation2] sm:$0xff]
      %v390 = vld [vmem:[#allocation2 + $0x8] sm:$0xff]
      %v391 = vld [vmem:[#allocation2 + $0x10] sm:$0xff]
      %v392 = vld [vmem:[#allocation2 + $0x18] sm:$0xff]
      %v393 = vld [vmem:[#allocation2 + $0x20] sm:$0xff]
      %v394 = vld [vmem:[#allocation2 + $0x28] sm:$0xff]
      %v395 = vld [vmem:[#allocation2 + $0x30] sm:$0xff]
      %v396 = vld [vmem:[#allocation2 + $0x38] sm:$0xff]
      %v397 = vld [vmem:[#allocation2 + $0x40] sm:$0xff]
      %v398 = vld [vmem:[#allocation2 + $0x48] sm:$0xff]
      %v399 = vld [vmem:[#allocation2 + $0x50] sm:$0xff]
      %v400 = vld [vmem:[#allocation2 + $0x58] sm:$0xff]
      %v401 = vld [vmem:[#allocation2 + $0x60] sm:$0xff]
      %v402 = vld [vmem:[#allocation2 + $0x68] sm:$0xff]
      %v403 = vld [vmem:[#allocation2 + $0x70] sm:$0xff]
      %v404 = vld [vmem:[#allocation2 + $0x78] sm:$0xff]
      %v405 = vld [vmem:[#allocation9] sm:$0xff]
      %v406 = vld [vmem:[#allocation9 + $0x8] sm:$0xff]
      %v407 = vld [vmem:[#allocation9 + $0x10] sm:$0xff]
      %v408 = vld [vmem:[#allocation9 + $0x18] sm:$0xff]
      %v409 = vld [vmem:[#allocation9 + $0x20] sm:$0xff]
      %v410 = vld [vmem:[#allocation9 + $0x28] sm:$0xff]
      %v411 = vld [vmem:[#allocation9 + $0x30] sm:$0xff]
      %v412 = vld [vmem:[#allocation9 + $0x38] sm:$0xff]
      %v413 = vld [vmem:[#allocation9 + $0x40] sm:$0xff]
      %v414 = vld [vmem:[#allocation9 + $0x48] sm:$0xff]
      %v415 = vld [vmem:[#allocation9 + $0x50] sm:$0xff]
      %v416 = vld [vmem:[#allocation9 + $0x58] sm:$0xff]
      %v417 = vld [vmem:[#allocation9 + $0x60] sm:$0xff]
      %v418 = vld [vmem:[#allocation9 + $0x68] sm:$0xff]
      %v419 = vld [vmem:[#allocation9 + $0x70] sm:$0xff]
      %v420 = vld [vmem:[#allocation9 + $0x78] sm:$0xff]
      %v421 = vld [vmem:[#allocation8] sm:$0xff]
      %v422 = vld [vmem:[#allocation8 + $0x8] sm:$0xff]
      %v423 = vld [vmem:[#allocation8 + $0x10] sm:$0xff]
      %v424 = vld [vmem:[#allocation8 + $0x18] sm:$0xff]
      %v425 = vld [vmem:[#allocation8 + $0x20] sm:$0xff]
      %v426 = vld [vmem:[#allocation8 + $0x28] sm:$0xff]
      %v427 = vld [vmem:[#allocation8 + $0x30] sm:$0xff]
      %v428 = vld [vmem:[#allocation8 + $0x38] sm:$0xff]
      %v429 = vld [vmem:[#allocation8 + $0x40] sm:$0xff]
      %v430 = vld [vmem:[#allocation8 + $0x48] sm:$0xff]
      %v431 = vld [vmem:[#allocation8 + $0x50] sm:$0xff]
      %v432 = vld [vmem:[#allocation8 + $0x58] sm:$0xff]
      %v433 = vld [vmem:[#allocation8 + $0x60] sm:$0xff]
      %v434 = vld [vmem:[#allocation8 + $0x68] sm:$0xff]
      %v435 = vld [vmem:[#allocation8 + $0x70] sm:$0xff]
      %v436 = vld [vmem:[#allocation8 + $0x78] sm:$0xff]
      %v437 = vld [vmem:[#allocation11] sm:$0xff]
      %v438 = vld [vmem:[#allocation11 + $0x8] sm:$0xff]
      %v439 = vld [vmem:[#allocation11 + $0x10] sm:$0xff]
      %v440 = vld [vmem:[#allocation11 + $0x18] sm:$0xff]
      %v441 = vld [vmem:[#allocation11 + $0x20] sm:$0xff]
      %v442 = vld [vmem:[#allocation11 + $0x28] sm:$0xff]
      %v443 = vld [vmem:[#allocation11 + $0x30] sm:$0xff]
      %v444 = vld [vmem:[#allocation11 + $0x38] sm:$0xff]
      %v445 = vld [vmem:[#allocation11 + $0x40] sm:$0xff]
      %v446 = vld [vmem:[#allocation11 + $0x48] sm:$0xff]
      %v447 = vld [vmem:[#allocation11 + $0x50] sm:$0xff]
      %v448 = vld [vmem:[#allocation11 + $0x58] sm:$0xff]
      %v449 = vld [vmem:[#allocation11 + $0x60] sm:$0xff]
      %v450 = vld [vmem:[#allocation11 + $0x68] sm:$0xff]
      %v451 = vld [vmem:[#allocation11 + $0x70] sm:$0xff]
      %v452 = vld [vmem:[#allocation11 + $0x78] sm:$0xff]
      %453 = vmatprep.subr.mxu0 0.0
      %454 = vmatpush1.msra.mxu0 %v452
      %455 = vmatprep.subr.mxu0 0.0
      %456 = vmatpush1.msra.mxu0 %v451
      %457 = vmatprep.subr.mxu0 0.0
      %458 = vmatpush1.msra.mxu0 %v450
      %459 = vmatprep.subr.mxu0 0.0
      %460 = vmatpush1.msra.mxu0 %v449
      %461 = vmatprep.subr.mxu0 0.0
      %462 = vmatpush1.msra.mxu0 %v448
      %463 = vmatprep.subr.mxu0 0.0
      %464 = vmatpush1.msra.mxu0 %v447
      %465 = vmatprep.subr.mxu0 0.0
      %466 = vmatpush1.msra.mxu0 %v446
      %467 = vmatprep.subr.mxu0 0.0
      %468 = vmatpush1.msra.mxu0 %v445
      %469 = vmatprep.subr.mxu0 0.0
      %470 = vmatpush1.msra.mxu0 %v444
      %471 = vmatprep.subr.mxu0 0.0
      %472 = vmatpush1.msra.mxu0 %v443
      %473 = vmatprep.subr.mxu0 0.0
      %474 = vmatpush1.msra.mxu0 %v442
      %475 = vmatprep.subr.mxu0 0.0
      %476 = vmatpush1.msra.mxu0 %v441
      %477 = vmatprep.subr.mxu0 0.0
      %478 = vmatpush1.msra.mxu0 %v440
      %479 = vmatprep.subr.mxu0 0.0
      %480 = vmatpush1.msra.mxu0 %v439
      %481 = vmatprep.subr.mxu0 0.0
      %482 = vmatpush1.msra.mxu0 %v438
      %483 = vmatprep.subr.mxu0 0.0
      %484 = vmatpush1.msra.mxu0 %v437
      %485 = vmatprep.subr.mxu0 0.0
      %486 = vmatpush2.msra.mxu0 0.0
      %487 = vmatprep.subr.mxu0 0.0
      %488 = vmatpush2.msra.mxu0 0.0
      %489 = vmatprep.subr.mxu0 0.0
      %490 = vmatpush2.msra.mxu0 0.0
      %491 = vmatprep.subr.mxu0 0.0
      %492 = vmatpush2.msra.mxu0 0.0
      %493 = vmatprep.subr.mxu0 0.0
      %494 = vmatpush2.msra.mxu0 0.0
      %495 = vmatprep.subr.mxu0 0.0
      %496 = vmatpush2.msra.mxu0 0.0
      %497 = vmatprep.subr.mxu0 0.0
      %498 = vmatpush2.msra.mxu0 0.0
      %499 = vmatprep.subr.mxu0 0.0
      %500 = vmatpush2.msra.mxu0 0.0
      %501 = vmatprep.subr.mxu0 0.0
      %502 = vmatpush2.msra.mxu0 0.0
      %503 = vmatprep.subr.mxu0 0.0
      %504 = vmatpush2.msra.mxu0 0.0
      %505 = vmatprep.subr.mxu0 0.0
      %506 = vmatpush2.msra.mxu0 0.0
      %507 = vmatprep.subr.mxu0 0.0
      %508 = vmatpush2.msra.mxu0 0.0
      %509 = vmatprep.subr.mxu0 0.0
      %510 = vmatpush2.msra.mxu0 0.0
      %511 = vmatprep.subr.mxu0 0.0
      %512 = vmatpush2.msra.mxu0 0.0
      %513 = vmatprep.subr.mxu0 0.0
      %514 = vmatpush2.msra.mxu0 0.0
      %515 = vmatprep.subr.mxu0 0.0
      %516 = vmatpush2.msra.mxu0 0.0
      %517 = vmatprep.mubr.f32.mxu0 0.0
      %518 = vmatmul.mubr.f32.gmra.mxu0 %v421
      %v519 = vpop.f32.mrf.mxu0
      %v520 = vadd.f32 0.0, %v519
      %v521 = vpop.f32.mrf.mxu0
      %522 = vmatprep.mubr.f32.mxu0 0.0
      %523 = vmatmul.mubr.f32.gmra.mxu0 %v422
      %v524 = vpop.f32.mrf.mxu0
      %v525 = vadd.f32 0.0, %v524
      %v526 = vpop.f32.mrf.mxu0
      %527 = vmatprep.mubr.f32.mxu0 0.0
      %528 = vmatmul.mubr.f32.gmra.mxu0 %v423
      %v529 = vpop.f32.mrf.mxu0
      %v530 = vadd.f32 0.0, %v529
      %v531 = vpop.f32.mrf.mxu0
      %532 = vmatprep.mubr.f32.mxu0 0.0
      %533 = vmatmul.mubr.f32.gmra.mxu0 %v424
      %v534 = vpop.f32.mrf.mxu0
      %v535 = vadd.f32 0.0, %v534
      %v536 = vpop.f32.mrf.mxu0
      %537 = vmatprep.mubr.f32.mxu0 0.0
      %538 = vmatmul.mubr.f32.gmra.mxu0 %v425
      %v539 = vpop.f32.mrf.mxu0
      %v540 = vadd.f32 0.0, %v539
      %v541 = vpop.f32.mrf.mxu0
      %542 = vmatprep.mubr.f32.mxu0 0.0
      %543 = vmatmul.mubr.f32.gmra.mxu0 %v426
      %v544 = vpop.f32.mrf.mxu0
      %v545 = vadd.f32 0.0, %v544
      %v546 = vpop.f32.mrf.mxu0
      %547 = vmatprep.mubr.f32.mxu0 0.0
      %548 = vmatmul.mubr.f32.gmra.mxu0 %v427
      %v549 = vpop.f32.mrf.mxu0
      %v550 = vadd.f32 0.0, %v549
      %v551 = vpop.f32.mrf.mxu0
      %552 = vmatprep.mubr.f32.mxu0 0.0
      %553 = vmatmul.mubr.f32.gmra.mxu0 %v428
      %v554 = vpop.f32.mrf.mxu0
      %v555 = vadd.f32 0.0, %v554
      %v556 = vpop.f32.mrf.mxu0
      %557 = vmatprep.mubr.f32.mxu0 0.0
      %558 = vmatmul.mubr.f32.gmra.mxu0 %v429
      %v559 = vpop.f32.mrf.mxu0
      %v560 = vadd.f32 0.0, %v559
      %v561 = vpop.f32.mrf.mxu0
      %562 = vmatprep.mubr.f32.mxu0 0.0
      %563 = vmatmul.mubr.f32.gmra.mxu0 %v430
      %v564 = vpop.f32.mrf.mxu0
      %v565 = vadd.f32 0.0, %v564
      %v566 = vpop.f32.mrf.mxu0
      %567 = vmatprep.mubr.f32.mxu0 0.0
      %568 = vmatmul.mubr.f32.gmra.mxu0 %v431
      %v569 = vpop.f32.mrf.mxu0
      %v570 = vadd.f32 0.0, %v569
      %v571 = vpop.f32.mrf.mxu0
      %572 = vmatprep.mubr.f32.mxu0 0.0
      %573 = vmatmul.mubr.f32.gmra.mxu0 %v432
      %v574 = vpop.f32.mrf.mxu0
      %v575 = vadd.f32 0.0, %v574
      %v576 = vpop.f32.mrf.mxu0
      %577 = vmatprep.mubr.f32.mxu0 0.0
      %578 = vmatmul.mubr.f32.gmra.mxu0 %v433
      %v579 = vpop.f32.mrf.mxu0
      %v580 = vadd.f32 0.0, %v579
      %v581 = vpop.f32.mrf.mxu0
      %582 = vmatprep.mubr.f32.mxu0 0.0
      %583 = vmatmul.mubr.f32.gmra.mxu0 %v434
      %v584 = vpop.f32.mrf.mxu0
      %v585 = vadd.f32 0.0, %v584
      %v586 = vpop.f32.mrf.mxu0
      %587 = vmatprep.mubr.f32.mxu0 0.0
      %588 = vmatmul.mubr.f32.gmra.mxu0 %v435
      %v589 = vpop.f32.mrf.mxu0
      %v590 = vadd.f32 0.0, %v589
      %v591 = vpop.f32.mrf.mxu0
      %592 = vmatprep.mubr.f32.mxu0 0.0
      %593 = vmatmul.mubr.f32.gmra.mxu0 %v436
      %v594 = vpop.f32.mrf.mxu0
      %v595 = vadd.f32 0.0, %v594
      %v596 = vpop.f32.mrf.mxu0
      %597 = vdwg.mxu0
      %598 = vmatprep.subr.mxu0 0.0
      %599 = vmatpush1.msra.mxu0 %v420
      %600 = vmatprep.subr.mxu0 0.0
      %601 = vmatpush1.msra.mxu0 %v419
      %602 = vmatprep.subr.mxu0 0.0
      %603 = vmatpush1.msra.mxu0 %v418
      %604 = vmatprep.subr.mxu0 0.0
      %605 = vmatpush1.msra.mxu0 %v417
      %606 = vmatprep.subr.mxu0 0.0
      %607 = vmatpush1.msra.mxu0 %v416
      %608 = vmatprep.subr.mxu0 0.0
      %609 = vmatpush1.msra.mxu0 %v415
      %610 = vmatprep.subr.mxu0 0.0
      %611 = vmatpush1.msra.mxu0 %v414
      %612 = vmatprep.subr.mxu0 0.0
      %613 = vmatpush1.msra.mxu0 %v413
      %614 = vmatprep.subr.mxu0 0.0
      %615 = vmatpush1.msra.mxu0 %v412
      %616 = vmatprep.subr.mxu0 0.0
      %617 = vmatpush1.msra.mxu0 %v411
      %618 = vmatprep.subr.mxu0 0.0
      %619 = vmatpush1.msra.mxu0 %v410
      %620 = vmatprep.subr.mxu0 0.0
      %621 = vmatpush1.msra.mxu0 %v409
      %622 = vmatprep.subr.mxu0 0.0
      %623 = vmatpush1.msra.mxu0 %v408
      %624 = vmatprep.subr.mxu0 0.0
      %625 = vmatpush1.msra.mxu0 %v407
      %626 = vmatprep.subr.mxu0 0.0
      %627 = vmatpush1.msra.mxu0 %v406
      %628 = vmatprep.subr.mxu0 0.0
      %629 = vmatpush1.msra.mxu0 %v405
      %630 = vmatprep.subr.mxu0 0.0
      %631 = vmatpush2.msra.mxu0 0.0
      %632 = vmatprep.subr.mxu0 0.0
      %633 = vmatpush2.msra.mxu0 0.0
      %634 = vmatprep.subr.mxu0 0.0
      %635 = vmatpush2.msra.mxu0 0.0
      %636 = vmatprep.subr.mxu0 0.0
      %637 = vmatpush2.msra.mxu0 0.0
      %638 = vmatprep.subr.mxu0 0.0
      %639 = vmatpush2.msra.mxu0 0.0
      %640 = vmatprep.subr.mxu0 0.0
      %641 = vmatpush2.msra.mxu0 0.0
      %642 = vmatprep.subr.mxu0 0.0
      %643 = vmatpush2.msra.mxu0 0.0
      %644 = vmatprep.subr.mxu0 0.0
      %645 = vmatpush2.msra.mxu0 0.0
      %646 = vmatprep.subr.mxu0 0.0
      %647 = vmatpush2.msra.mxu0 0.0
      %648 = vmatprep.subr.mxu0 0.0
      %649 = vmatpush2.msra.mxu0 0.0
      %650 = vmatprep.subr.mxu0 0.0
      %651 = vmatpush2.msra.mxu0 0.0
      %652 = vmatprep.subr.mxu0 0.0
      %653 = vmatpush2.msra.mxu0 0.0
      %654 = vmatprep.subr.mxu0 0.0
      %655 = vmatpush2.msra.mxu0 0.0
      %656 = vmatprep.subr.mxu0 0.0
      %657 = vmatpush2.msra.mxu0 0.0
      %658 = vmatprep.subr.mxu0 0.0
      %659 = vmatpush2.msra.mxu0 0.0
      %660 = vmatprep.subr.mxu0 0.0
      %661 = vmatpush2.msra.mxu0 0.0
      %662 = vmatprep.mubr.f32.mxu0 0.0
      %663 = vmatmul.mubr.f32.gmra.mxu0 %v389
      %v664 = vpop.f32.mrf.mxu0
      %v665 = vadd.f32 %v520, %v664
      %v666 = vpop.f32.mrf.mxu0
      %667 = vmatprep.mubr.f32.mxu0 0.0
      %668 = vmatmul.mubr.f32.gmra.mxu0 %v390
      %v669 = vpop.f32.mrf.mxu0
      %v670 = vadd.f32 %v525, %v669
      %v671 = vpop.f32.mrf.mxu0
      %672 = vmatprep.mubr.f32.mxu0 0.0
      %673 = vmatmul.mubr.f32.gmra.mxu0 %v391
      %v674 = vpop.f32.mrf.mxu0
      %v675 = vadd.f32 %v530, %v674
      %v676 = vpop.f32.mrf.mxu0
      %677 = vmatprep.mubr.f32.mxu0 0.0
      %678 = vmatmul.mubr.f32.gmra.mxu0 %v392
      %v679 = vpop.f32.mrf.mxu0
      %v680 = vadd.f32 %v535, %v679
      %v681 = vpop.f32.mrf.mxu0
      %682 = vmatprep.mubr.f32.mxu0 0.0
      %683 = vmatmul.mubr.f32.gmra.mxu0 %v393
      %v684 = vpop.f32.mrf.mxu0
      %v685 = vadd.f32 %v540, %v684
      %v686 = vpop.f32.mrf.mxu0
      %687 = vmatprep.mubr.f32.mxu0 0.0
      %688 = vmatmul.mubr.f32.gmra.mxu0 %v394
      %v689 = vpop.f32.mrf.mxu0
      %v690 = vadd.f32 %v545, %v689
      %v691 = vpop.f32.mrf.mxu0
      %692 = vmatprep.mubr.f32.mxu0 0.0
      %693 = vmatmul.mubr.f32.gmra.mxu0 %v395
      %v694 = vpop.f32.mrf.mxu0
      %v695 = vadd.f32 %v550, %v694
      %v696 = vpop.f32.mrf.mxu0
      %697 = vmatprep.mubr.f32.mxu0 0.0
      %698 = vmatmul.mubr.f32.gmra.mxu0 %v396
      %v699 = vpop.f32.mrf.mxu0
      %v700 = vadd.f32 %v555, %v699
      %v701 = vpop.f32.mrf.mxu0
      %702 = vmatprep.mubr.f32.mxu0 0.0
      %703 = vmatmul.mubr.f32.gmra.mxu0 %v397
      %v704 = vpop.f32.mrf.mxu0
      %v705 = vadd.f32 %v560, %v704
      %v706 = vpop.f32.mrf.mxu0
      %707 = vmatprep.mubr.f32.mxu0 0.0
      %708 = vmatmul.mubr.f32.gmra.mxu0 %v398
      %v709 = vpop.f32.mrf.mxu0
      %v710 = vadd.f32 %v565, %v709
      %v711 = vpop.f32.mrf.mxu0
      %712 = vmatprep.mubr.f32.mxu0 0.0
      %713 = vmatmul.mubr.f32.gmra.mxu0 %v399
      %v714 = vpop.f32.mrf.mxu0
      %v715 = vadd.f32 %v570, %v714
      %v716 = vpop.f32.mrf.mxu0
      %717 = vmatprep.mubr.f32.mxu0 0.0
      %718 = vmatmul.mubr.f32.gmra.mxu0 %v400
      %v719 = vpop.f32.mrf.mxu0
      %v720 = vadd.f32 %v575, %v719
      %v721 = vpop.f32.mrf.mxu0
      %722 = vmatprep.mubr.f32.mxu0 0.0
      %723 = vmatmul.mubr.f32.gmra.mxu0 %v401
      %v724 = vpop.f32.mrf.mxu0
      %v725 = vadd.f32 %v580, %v724
      %v726 = vpop.f32.mrf.mxu0
      %727 = vmatprep.mubr.f32.mxu0 0.0
      %728 = vmatmul.mubr.f32.gmra.mxu0 %v402
      %v729 = vpop.f32.mrf.mxu0
      %v730 = vadd.f32 %v585, %v729
      %v731 = vpop.f32.mrf.mxu0
      %732 = vmatprep.mubr.f32.mxu0 0.0
      %733 = vmatmul.mubr.f32.gmra.mxu0 %v403
      %v734 = vpop.f32.mrf.mxu0
      %v735 = vadd.f32 %v590, %v734
      %v736 = vpop.f32.mrf.mxu0
      %737 = vmatprep.mubr.f32.mxu0 0.0
      %738 = vmatmul.mubr.f32.gmra.mxu0 %v404
      %v739 = vpop.f32.mrf.mxu0
      %v740 = vadd.f32 %v595, %v739
      %v741 = vpop.f32.mrf.mxu0
      %742 = vdwg.mxu0
      %v743 = vld [vmem:[%s5] sm:$0x1]
      %v745 = vlaneseq
      %v746 = vshrl.u32 %v745, 7
      %v747 = vsub.s32 0, %v746
      %v748 = vrot.slane %v743, %v747
      %v750 = vadd.f32 %v665, %v748
      %v751 = vadd.f32 %v670, %v748
      %v752 = vadd.f32 %v675, %v748
      %v753 = vadd.f32 %v680, %v748
      %v754 = vadd.f32 %v685, %v748
      %v755 = vadd.f32 %v690, %v748
      %v756 = vadd.f32 %v695, %v748
      %v757 = vadd.f32 %v700, %v748
      %v758 = vadd.f32 %v705, %v748
      %v759 = vadd.f32 %v710, %v748
      %v760 = vadd.f32 %v715, %v748
      %v761 = vadd.f32 %v720, %v748
      %v762 = vadd.f32 %v725, %v748
      %v763 = vadd.f32 %v730, %v748
      %v764 = vadd.f32 %v735, %v748
      %v765 = vadd.f32 %v740, %v748
      %v766 = vmax.f32 %v750, 0.0
      %v767 = vmax.f32 %v751, 0.0
      %v768 = vmax.f32 %v752, 0.0
      %v769 = vmax.f32 %v753, 0.0
      %v770 = vmax.f32 %v754, 0.0
      %v771 = vmax.f32 %v755, 0.0
      %v772 = vmax.f32 %v756, 0.0
      %v773 = vmax.f32 %v757, 0.0
      %v774 = vmax.f32 %v758, 0.0
      %v775 = vmax.f32 %v759, 0.0
      %v776 = vmax.f32 %v760, 0.0
      %v777 = vmax.f32 %v761, 0.0
      %v778 = vmax.f32 %v762, 0.0
      %v779 = vmax.f32 %v763, 0.0
      %v780 = vmax.f32 %v764, 0.0
      %v781 = vmax.f32 %v765, 0.0
      %782 = vst [vmem:[#allocation12] sm:$0xff] %v766
      %783 = vst [vmem:[#allocation12 + $0x8] sm:$0xff] %v767
      %784 = vst [vmem:[#allocation12 + $0x10] sm:$0xff] %v768
      %785 = vst [vmem:[#allocation12 + $0x18] sm:$0xff] %v769
      %786 = vst [vmem:[#allocation12 + $0x20] sm:$0xff] %v770
      %787 = vst [vmem:[#allocation12 + $0x28] sm:$0xff] %v771
      %788 = vst [vmem:[#allocation12 + $0x30] sm:$0xff] %v772
      %789 = vst [vmem:[#allocation12 + $0x38] sm:$0xff] %v773
      %790 = vst [vmem:[#allocation12 + $0x40] sm:$0xff] %v774
      %791 = vst [vmem:[#allocation12 + $0x48] sm:$0xff] %v775
      %792 = vst [vmem:[#allocation12 + $0x50] sm:$0xff] %v776
      %793 = vst [vmem:[#allocation12 + $0x58] sm:$0xff] %v777
      %794 = vst [vmem:[#allocation12 + $0x60] sm:$0xff] %v778
      %795 = vst [vmem:[#allocation12 + $0x68] sm:$0xff] %v779
      %796 = vst [vmem:[#allocation12 + $0x70] sm:$0xff] %v780
      %797 = vst [vmem:[#allocation12 + $0x78] sm:$0xff] %v781
    $region53: #{tpu_custom_call.1} parent=1 // pred_fallthru
      _
    // Predicated region
    $region54: #{tpu_custom_call.1} parent=1 // pred_check
      _
    $region55: #{tpu_custom_call.1} parent=1 // pred_check_branch
      %799 = sbr.rel (0) target = $region57
    $region56: #{tpu_custom_call.1} parent=1 // pred_region
      %s801 = ssub.s32 2048, 2048
      %802 = vsyncadd [#allocation5], %s801
      %s803 = sshll.u32 [#allocation12], 4
      %s804 = int_to_ptr.vmem [resolvable:$true] %s803
      %809 = dma.vmem_to_hbm [thread:$0]  %s804, 2048, %s6, [#allocation5], 128, 128, 8
    $region57: #{tpu_custom_call.1} parent=1 // pred_fallthru
      _
    // Predicated region
    $region58: #{tpu_custom_call.1} parent=1 // pred_check
      _
    $region59: #{tpu_custom_call.1} parent=1 // pred_check_branch
      %811 = sbr.rel (0) target = $region61
    $region60: #{tpu_custom_call.1} parent=1 // pred_region
      %812 = dma.done [#allocation5], 2048
    $region61: #{tpu_custom_call.1} parent=1 // pred_fallthru
      _
    %813 = vsyncpa [#allocation4], 1
    %814 = vsyncpa [#allocation7], 1
    %815 = vsyncpa [#allocation10], 1
    %816 = vsyncpa [#allocation5], 1

</llo_original>
